<compile_context>
chip_gen: v5e
topology: v5e:2x2
jax: 0.10.0
libtpu: 0.0.40
codegen_flags: <defaults>
</compile_context>

<pallas_src>
import functools

import jax
import jax.numpy as jnp
import numpy as np
from jax.experimental import pallas as pl
from jax.experimental.pallas import tpu as pltpu

# Spherical-harmonic constants (identical to the PyTorch module).
C0 = 0.28209479177387814
C1 = 0.4886025119029199
C2 = [1.0925484305920792, -1.0925484305920792, 0.31539156525252005,
      -1.0925484305920792, 0.5462742152960396]
C3 = [-0.5900435899266435, 2.890611442640554, -0.4570457994644658,
      0.3731763325901154, -0.4570457994644658, 1.445305721320277,
      -0.5900435899266435]
C4 = [2.5033429417967046, -1.7701307697799304, 0.9461746957575601,
      -0.6690465435572892, 0.10578554691520431, -0.6690465435572892,
      0.47308734787878004, -1.7701307697799304, 0.6258357354491761]


def _sh_rows(x, y, z, degree):
    """List of SH basis terms (each the same shape as x); shared by kernel & ref."""
    rows = [jnp.full_like(x, C0)]
    if degree > 1:
        rows += [-C1 * y, C1 * z, -C1 * x]
        if degree > 2:
            xx, yy, zz = x * x, y * y, z * z
            xy, yz, xz = x * y, y * z, x * z
            xx_m_yy = xx - yy                       # hoisted shared subterms
            rows += [
                C2[0] * xy,
                C2[1] * yz,
                C2[2] * (2.0 * zz - xx - yy),
                C2[3] * xz,
                C2[4] * xx_m_yy,
            ]
            if degree > 3:
                xx3_m_yy = 3.0 * xx - yy
                xx_m_3yy = xx - 3.0 * yy
                zz4_m_xx_yy = 4.0 * zz - xx - yy
                rows += [
                    C3[0] * y * xx3_m_yy,
                    C3[1] * xy * z,
                    C3[2] * y * zz4_m_xx_yy,
                    C3[3] * z * (2.0 * zz - 3.0 * xx - 3.0 * yy),
                    C3[4] * x * zz4_m_xx_yy,
                    C3[5] * z * xx_m_yy,
                    C3[6] * x * xx_m_3yy,
                ]
                if degree > 4:
                    zz7 = 7.0 * zz
                    rows += [
                        C4[0] * xy * xx_m_yy,
                        C4[1] * yz * xx3_m_yy,
                        C4[2] * xy * (zz7 - 1.0),
                        C4[3] * yz * (zz7 - 3.0),
                        C4[4] * (zz * (35.0 * zz - 30.0) + 3.0),
                        C4[5] * xz * (zz7 - 3.0),
                        C4[6] * xx_m_yy * (zz7 - 1.0),
                        C4[7] * xz * xx_m_3yy,
                        C4[8] * (xx * xx_m_3yy - yy * xx3_m_yy),
                    ]
    return rows


def _make_sh_kernel(degree):
    def kernel(in_ref, out_ref):
        # in_ref:  (3, TR, L)        full (sublane, lane) tiles per channel
        # out_ref: (out_dim, TR, L)
        x = in_ref[0].astype(jnp.float32)   # keep polynomial math in f32
        y = in_ref[1].astype(jnp.float32)
        z = in_ref[2].astype(jnp.float32)
        rows = _sh_rows(x, y, z, degree)
        for k, row in enumerate(rows):      # direct per-channel stores, no concat
            out_ref[k] = row.astype(out_ref.dtype)
    return kernel


@functools.partial(jax.jit, static_argnames=("degree", "block_rows", "lanes"))
def sh_encode(inp, degree=4, block_rows=32, lanes=512):
    """Pallas SHEncoder forward. inp: (..., 3) -> (..., degree**2)."""
    assert inp.shape[-1] == 3
    assert 1 <= degree <= 5
    assert lanes % 128 == 0 and block_rows % 8 == 0
    out_dim = degree ** 2
    lead_shape = inp.shape[:-1]
    n = int(np.prod(lead_shape)) if lead_shape else 1

    # channels-first, fully tile-packed layout: (3, R, lanes)
    r = pl.cdiv(n, lanes)                               # rows of `lanes` points
    tr = min(block_rows, ((r + 7) // 8) * 8)            # sublane rows per block
    r_pad = pl.cdiv(r, tr) * tr
    n_pad = r_pad * lanes

    x_cf = inp.reshape(n, 3).T                          # (3, N) — cheap (3 rows)
    x_cf = jnp.pad(x_cf, ((0, 0), (0, n_pad - n)))      # padded tail is zeros
    x_cf = x_cf.reshape(3, r_pad, lanes)

    out_cf = pl.pallas_call(
        _make_sh_kernel(degree),
        out_shape=jax.ShapeDtypeStruct((out_dim, r_pad, lanes), inp.dtype),
        grid=(r_pad // tr,),
        in_specs=[pl.BlockSpec((3, tr, lanes), lambda i: (0, i, 0))],
        out_specs=pl.BlockSpec((out_dim, tr, lanes), lambda i: (0, i, 0)),
        compiler_params=pltpu.CompilerParams(
            dimension_semantics=("parallel",)),
    )(x_cf)

    # back to the PyTorch channels-last layout (see TODO at top of file)
    out = out_cf.reshape(out_dim, n_pad)[:, :n].T.reshape(*lead_shape, out_dim)
    return out


def sh_encode_reference(inp, degree=4):
    """Pure-JAX reference matching the PyTorch forward."""
    lead_shape = inp.shape[:-1]
    n = int(np.prod(lead_shape)) if lead_shape else 1
    flat = inp.reshape(n, 3)
    x, y, z = flat[:, 0], flat[:, 1], flat[:, 2]
    rows = _sh_rows(x, y, z, degree)
    return jnp.stack(rows, axis=-1).reshape(*lead_shape, degree ** 2)


if __name__ == "__main__":
    key = jax.random.PRNGKey(0)
    # small shape consistent with (..., 3) input: batch=2, seq=8, coords=3
    inp = jax.random.normal(key, (2, 8, 3), dtype=jnp.float32)
    # normalize to unit directions (typical SH usage); semantics are identical
    inp = inp / jnp.linalg.norm(inp, axis=-1, keepdims=True)

    out = sh_encode(inp, degree=4)
    out = jax.block_until_ready(out)

    ref = sh_encode_reference(inp, degree=4)
    assert out.shape == (2, 8, 16), out.shape
    np.testing.assert_allclose(np.asarray(out), np.asarray(ref),
                               rtol=1e-5, atol=1e-5)
    print("KERNEL_OK")
</pallas_src>

<mosaic_0001>
module attributes {stable_mosaic.version = 11 : i64} {
  func.func @kernel(%arg0: i32, %arg1: memref<3x8x512xf32, #tpu.memory_space<vmem>>, %arg2: memref<16x8x512xf32, #tpu.memory_space<vmem>>) attributes {dimension_semantics = [#tpu.dimension_semantics<parallel>], iteration_bounds = array<i64: 1>, scalar_prefetch = 0 : i64, scratch_operands = 0 : i64, tpu.core_type = #tpu.core_type<tc>, window_params = [{transform_indices = @transform_0, window_bounds = array<i64: 3, 8, 512>}, {transform_indices = @transform_1, window_bounds = array<i64: 16, 8, 512>}]} {
    %c0 = arith.constant 0 : index
    %c0_0 = arith.constant 0 : index
    %c0_1 = arith.constant 0 : index
    %0 = vector.load %arg1[%c0, %c0_0, %c0_1] : memref<3x8x512xf32, #tpu.memory_space<vmem>>, vector<1x8x512xf32>
    %1 = vector.shape_cast %0 : vector<1x8x512xf32> to vector<8x512xf32>
    %c1 = arith.constant 1 : index
    %c0_2 = arith.constant 0 : index
    %c0_3 = arith.constant 0 : index
    %2 = vector.load %arg1[%c1, %c0_2, %c0_3] : memref<3x8x512xf32, #tpu.memory_space<vmem>>, vector<1x8x512xf32>
    %3 = vector.shape_cast %2 : vector<1x8x512xf32> to vector<8x512xf32>
    %c2 = arith.constant 2 : index
    %c0_4 = arith.constant 0 : index
    %c0_5 = arith.constant 0 : index
    %4 = vector.load %arg1[%c2, %c0_4, %c0_5] : memref<3x8x512xf32, #tpu.memory_space<vmem>>, vector<1x8x512xf32>
    %5 = vector.shape_cast %4 : vector<1x8x512xf32> to vector<8x512xf32>
    %cst = arith.constant 0.282094806 : f32
    %6 = vector.broadcast %cst : f32 to vector<8x512xf32>
    %cst_6 = arith.constant -0.488602519 : f32
    %7 = vector.broadcast %cst_6 : f32 to vector<8x512xf32>
    %8 = arith.mulf %7, %3 : vector<8x512xf32>
    %cst_7 = arith.constant 0.488602519 : f32
    %9 = vector.broadcast %cst_7 : f32 to vector<8x512xf32>
    %10 = arith.mulf %9, %5 : vector<8x512xf32>
    %cst_8 = arith.constant -0.488602519 : f32
    %11 = vector.broadcast %cst_8 : f32 to vector<8x512xf32>
    %12 = arith.mulf %11, %1 : vector<8x512xf32>
    %13 = arith.mulf %1, %1 : vector<8x512xf32>
    %14 = arith.mulf %3, %3 : vector<8x512xf32>
    %15 = arith.mulf %5, %5 : vector<8x512xf32>
    %16 = arith.mulf %1, %3 : vector<8x512xf32>
    %17 = arith.mulf %3, %5 : vector<8x512xf32>
    %18 = arith.mulf %1, %5 : vector<8x512xf32>
    %19 = arith.subf %13, %14 : vector<8x512xf32>
    %cst_9 = arith.constant 1.09254849 : f32
    %20 = vector.broadcast %cst_9 : f32 to vector<8x512xf32>
    %21 = arith.mulf %20, %16 : vector<8x512xf32>
    %cst_10 = arith.constant -1.09254849 : f32
    %22 = vector.broadcast %cst_10 : f32 to vector<8x512xf32>
    %23 = arith.mulf %22, %17 : vector<8x512xf32>
    %cst_11 = arith.constant 2.000000e+00 : f32
    %24 = vector.broadcast %cst_11 : f32 to vector<8x512xf32>
    %25 = arith.mulf %24, %15 : vector<8x512xf32>
    %26 = arith.subf %25, %13 : vector<8x512xf32>
    %27 = arith.subf %26, %14 : vector<8x512xf32>
    %cst_12 = arith.constant 0.31539157 : f32
    %28 = vector.broadcast %cst_12 : f32 to vector<8x512xf32>
    %29 = arith.mulf %28, %27 : vector<8x512xf32>
    %cst_13 = arith.constant -1.09254849 : f32
    %30 = vector.broadcast %cst_13 : f32 to vector<8x512xf32>
    %31 = arith.mulf %30, %18 : vector<8x512xf32>
    %cst_14 = arith.constant 0.546274245 : f32
    %32 = vector.broadcast %cst_14 : f32 to vector<8x512xf32>
    %33 = arith.mulf %32, %19 : vector<8x512xf32>
    %cst_15 = arith.constant 3.000000e+00 : f32
    %34 = vector.broadcast %cst_15 : f32 to vector<8x512xf32>
    %35 = arith.mulf %34, %13 : vector<8x512xf32>
    %36 = arith.subf %35, %14 : vector<8x512xf32>
    %cst_16 = arith.constant 3.000000e+00 : f32
    %37 = vector.broadcast %cst_16 : f32 to vector<8x512xf32>
    %38 = arith.mulf %37, %14 : vector<8x512xf32>
    %39 = arith.subf %13, %38 : vector<8x512xf32>
    %cst_17 = arith.constant 4.000000e+00 : f32
    %40 = vector.broadcast %cst_17 : f32 to vector<8x512xf32>
    %41 = arith.mulf %40, %15 : vector<8x512xf32>
    %42 = arith.subf %41, %13 : vector<8x512xf32>
    %43 = arith.subf %42, %14 : vector<8x512xf32>
    %cst_18 = arith.constant -0.590043604 : f32
    %44 = vector.broadcast %cst_18 : f32 to vector<8x512xf32>
    %45 = arith.mulf %44, %3 : vector<8x512xf32>
    %46 = arith.mulf %45, %36 : vector<8x512xf32>
    %cst_19 = arith.constant 2.89061141 : f32
    %47 = vector.broadcast %cst_19 : f32 to vector<8x512xf32>
    %48 = arith.mulf %47, %16 : vector<8x512xf32>
    %49 = arith.mulf %48, %5 : vector<8x512xf32>
    %cst_20 = arith.constant -0.457045794 : f32
    %50 = vector.broadcast %cst_20 : f32 to vector<8x512xf32>
    %51 = arith.mulf %50, %3 : vector<8x512xf32>
    %52 = arith.mulf %51, %43 : vector<8x512xf32>
    %cst_21 = arith.constant 0.373176336 : f32
    %53 = vector.broadcast %cst_21 : f32 to vector<8x512xf32>
    %54 = arith.mulf %53, %5 : vector<8x512xf32>
    %cst_22 = arith.constant 2.000000e+00 : f32
    %55 = vector.broadcast %cst_22 : f32 to vector<8x512xf32>
    %56 = arith.mulf %55, %15 : vector<8x512xf32>
    %cst_23 = arith.constant 3.000000e+00 : f32
    %57 = vector.broadcast %cst_23 : f32 to vector<8x512xf32>
    %58 = arith.mulf %57, %13 : vector<8x512xf32>
    %59 = arith.subf %56, %58 : vector<8x512xf32>
    %cst_24 = arith.constant 3.000000e+00 : f32
    %60 = vector.broadcast %cst_24 : f32 to vector<8x512xf32>
    %61 = arith.mulf %60, %14 : vector<8x512xf32>
    %62 = arith.subf %59, %61 : vector<8x512xf32>
    %63 = arith.mulf %54, %62 : vector<8x512xf32>
    %cst_25 = arith.constant -0.457045794 : f32
    %64 = vector.broadcast %cst_25 : f32 to vector<8x512xf32>
    %65 = arith.mulf %64, %1 : vector<8x512xf32>
    %66 = arith.mulf %65, %43 : vector<8x512xf32>
    %cst_26 = arith.constant 1.44530571 : f32
    %67 = vector.broadcast %cst_26 : f32 to vector<8x512xf32>
    %68 = arith.mulf %67, %5 : vector<8x512xf32>
    %69 = arith.mulf %68, %19 : vector<8x512xf32>
    %cst_27 = arith.constant -0.590043604 : f32
    %70 = vector.broadcast %cst_27 : f32 to vector<8x512xf32>
    %71 = arith.mulf %70, %1 : vector<8x512xf32>
    %72 = arith.mulf %71, %39 : vector<8x512xf32>
    %c0_28 = arith.constant 0 : index
    %c0_29 = arith.constant 0 : index
    %c0_30 = arith.constant 0 : index
    %73 = vector.load %arg2[%c0_28, %c0_29, %c0_30] : memref<16x8x512xf32, #tpu.memory_space<vmem>>, vector<1x8x512xf32>
    %74 = vector.shape_cast %73 : vector<1x8x512xf32> to vector<8x512xf32>
    %75 = vector.shape_cast %6 : vector<8x512xf32> to vector<1x8x512xf32>
    tpu.vector_store %arg2[%c0_28, %c0_29, %c0_30], %75 {strides = array<i32>} : memref<16x8x512xf32, #tpu.memory_space<vmem>>, vector<1x8x512xf32>,
    %c1_31 = arith.constant 1 : index
    %c0_32 = arith.constant 0 : index
    %c0_33 = arith.constant 0 : index
    %76 = vector.load %arg2[%c1_31, %c0_32, %c0_33] : memref<16x8x512xf32, #tpu.memory_space<vmem>>, vector<1x8x512xf32>
    %77 = vector.shape_cast %76 : vector<1x8x512xf32> to vector<8x512xf32>
    %78 = vector.shape_cast %8 : vector<8x512xf32> to vector<1x8x512xf32>
    tpu.vector_store %arg2[%c1_31, %c0_32, %c0_33], %78 {strides = array<i32>} : memref<16x8x512xf32, #tpu.memory_space<vmem>>, vector<1x8x512xf32>,
    %c2_34 = arith.constant 2 : index
    %c0_35 = arith.constant 0 : index
    %c0_36 = arith.constant 0 : index
    %79 = vector.load %arg2[%c2_34, %c0_35, %c0_36] : memref<16x8x512xf32, #tpu.memory_space<vmem>>, vector<1x8x512xf32>
    %80 = vector.shape_cast %79 : vector<1x8x512xf32> to vector<8x512xf32>
    %81 = vector.shape_cast %10 : vector<8x512xf32> to vector<1x8x512xf32>
    tpu.vector_store %arg2[%c2_34, %c0_35, %c0_36], %81 {strides = array<i32>} : memref<16x8x512xf32, #tpu.memory_space<vmem>>, vector<1x8x512xf32>,
    %c3 = arith.constant 3 : index
    %c0_37 = arith.constant 0 : index
    %c0_38 = arith.constant 0 : index
    %82 = vector.load %arg2[%c3, %c0_37, %c0_38] : memref<16x8x512xf32, #tpu.memory_space<vmem>>, vector<1x8x512xf32>
    %83 = vector.shape_cast %82 : vector<1x8x512xf32> to vector<8x512xf32>
    %84 = vector.shape_cast %12 : vector<8x512xf32> to vector<1x8x512xf32>
    tpu.vector_store %arg2[%c3, %c0_37, %c0_38], %84 {strides = array<i32>} : memref<16x8x512xf32, #tpu.memory_space<vmem>>, vector<1x8x512xf32>,
    %c4 = arith.constant 4 : index
    %c0_39 = arith.constant 0 : index
    %c0_40 = arith.constant 0 : index
    %85 = vector.load %arg2[%c4, %c0_39, %c0_40] : memref<16x8x512xf32, #tpu.memory_space<vmem>>, vector<1x8x512xf32>
    %86 = vector.shape_cast %85 : vector<1x8x512xf32> to vector<8x512xf32>
    %87 = vector.shape_cast %21 : vector<8x512xf32> to vector<1x8x512xf32>
    tpu.vector_store %arg2[%c4, %c0_39, %c0_40], %87 {strides = array<i32>} : memref<16x8x512xf32, #tpu.memory_space<vmem>>, vector<1x8x512xf32>,
    %c5 = arith.constant 5 : index
    %c0_41 = arith.constant 0 : index
    %c0_42 = arith.constant 0 : index
    %88 = vector.load %arg2[%c5, %c0_41, %c0_42] : memref<16x8x512xf32, #tpu.memory_space<vmem>>, vector<1x8x512xf32>
    %89 = vector.shape_cast %88 : vector<1x8x512xf32> to vector<8x512xf32>
    %90 = vector.shape_cast %23 : vector<8x512xf32> to vector<1x8x512xf32>
    tpu.vector_store %arg2[%c5, %c0_41, %c0_42], %90 {strides = array<i32>} : memref<16x8x512xf32, #tpu.memory_space<vmem>>, vector<1x8x512xf32>,
    %c6 = arith.constant 6 : index
    %c0_43 = arith.constant 0 : index
    %c0_44 = arith.constant 0 : index
    %91 = vector.load %arg2[%c6, %c0_43, %c0_44] : memref<16x8x512xf32, #tpu.memory_space<vmem>>, vector<1x8x512xf32>
    %92 = vector.shape_cast %91 : vector<1x8x512xf32> to vector<8x512xf32>
    %93 = vector.shape_cast %29 : vector<8x512xf32> to vector<1x8x512xf32>
    tpu.vector_store %arg2[%c6, %c0_43, %c0_44], %93 {strides = array<i32>} : memref<16x8x512xf32, #tpu.memory_space<vmem>>, vector<1x8x512xf32>,
    %c7 = arith.constant 7 : index
    %c0_45 = arith.constant 0 : index
    %c0_46 = arith.constant 0 : index
    %94 = vector.load %arg2[%c7, %c0_45, %c0_46] : memref<16x8x512xf32, #tpu.memory_space<vmem>>, vector<1x8x512xf32>
    %95 = vector.shape_cast %94 : vector<1x8x512xf32> to vector<8x512xf32>
    %96 = vector.shape_cast %31 : vector<8x512xf32> to vector<1x8x512xf32>
    tpu.vector_store %arg2[%c7, %c0_45, %c0_46], %96 {strides = array<i32>} : memref<16x8x512xf32, #tpu.memory_space<vmem>>, vector<1x8x512xf32>,
    %c8 = arith.constant 8 : index
    %c0_47 = arith.constant 0 : index
    %c0_48 = arith.constant 0 : index
    %97 = vector.load %arg2[%c8, %c0_47, %c0_48] : memref<16x8x512xf32, #tpu.memory_space<vmem>>, vector<1x8x512xf32>
    %98 = vector.shape_cast %97 : vector<1x8x512xf32> to vector<8x512xf32>
    %99 = vector.shape_cast %33 : vector<8x512xf32> to vector<1x8x512xf32>
    tpu.vector_store %arg2[%c8, %c0_47, %c0_48], %99 {strides = array<i32>} : memref<16x8x512xf32, #tpu.memory_space<vmem>>, vector<1x8x512xf32>,
    %c9 = arith.constant 9 : index
    %c0_49 = arith.constant 0 : index
    %c0_50 = arith.constant 0 : index
    %100 = vector.load %arg2[%c9, %c0_49, %c0_50] : memref<16x8x512xf32, #tpu.memory_space<vmem>>, vector<1x8x512xf32>
    %101 = vector.shape_cast %100 : vector<1x8x512xf32> to vector<8x512xf32>
    %102 = vector.shape_cast %46 : vector<8x512xf32> to vector<1x8x512xf32>
    tpu.vector_store %arg2[%c9, %c0_49, %c0_50], %102 {strides = array<i32>} : memref<16x8x512xf32, #tpu.memory_space<vmem>>, vector<1x8x512xf32>,
    %c10 = arith.constant 10 : index
    %c0_51 = arith.constant 0 : index
    %c0_52 = arith.constant 0 : index
    %103 = vector.load %arg2[%c10, %c0_51, %c0_52] : memref<16x8x512xf32, #tpu.memory_space<vmem>>, vector<1x8x512xf32>
    %104 = vector.shape_cast %103 : vector<1x8x512xf32> to vector<8x512xf32>
    %105 = vector.shape_cast %49 : vector<8x512xf32> to vector<1x8x512xf32>
    tpu.vector_store %arg2[%c10, %c0_51, %c0_52], %105 {strides = array<i32>} : memref<16x8x512xf32, #tpu.memory_space<vmem>>, vector<1x8x512xf32>,
    %c11 = arith.constant 11 : index
    %c0_53 = arith.constant 0 : index
    %c0_54 = arith.constant 0 : index
    %106 = vector.load %arg2[%c11, %c0_53, %c0_54] : memref<16x8x512xf32, #tpu.memory_space<vmem>>, vector<1x8x512xf32>
    %107 = vector.shape_cast %106 : vector<1x8x512xf32> to vector<8x512xf32>
    %108 = vector.shape_cast %52 : vector<8x512xf32> to vector<1x8x512xf32>
    tpu.vector_store %arg2[%c11, %c0_53, %c0_54], %108 {strides = array<i32>} : memref<16x8x512xf32, #tpu.memory_space<vmem>>, vector<1x8x512xf32>,
    %c12 = arith.constant 12 : index
    %c0_55 = arith.constant 0 : index
    %c0_56 = arith.constant 0 : index
    %109 = vector.load %arg2[%c12, %c0_55, %c0_56] : memref<16x8x512xf32, #tpu.memory_space<vmem>>, vector<1x8x512xf32>
    %110 = vector.shape_cast %109 : vector<1x8x512xf32> to vector<8x512xf32>
    %111 = vector.shape_cast %63 : vector<8x512xf32> to vector<1x8x512xf32>
    tpu.vector_store %arg2[%c12, %c0_55, %c0_56], %111 {strides = array<i32>} : memref<16x8x512xf32, #tpu.memory_space<vmem>>, vector<1x8x512xf32>,
    %c13 = arith.constant 13 : index
    %c0_57 = arith.constant 0 : index
    %c0_58 = arith.constant 0 : index
    %112 = vector.load %arg2[%c13, %c0_57, %c0_58] : memref<16x8x512xf32, #tpu.memory_space<vmem>>, vector<1x8x512xf32>
    %113 = vector.shape_cast %112 : vector<1x8x512xf32> to vector<8x512xf32>
    %114 = vector.shape_cast %66 : vector<8x512xf32> to vector<1x8x512xf32>
    tpu.vector_store %arg2[%c13, %c0_57, %c0_58], %114 {strides = array<i32>} : memref<16x8x512xf32, #tpu.memory_space<vmem>>, vector<1x8x512xf32>,
    %c14 = arith.constant 14 : index
    %c0_59 = arith.constant 0 : index
    %c0_60 = arith.constant 0 : index
    %115 = vector.load %arg2[%c14, %c0_59, %c0_60] : memref<16x8x512xf32, #tpu.memory_space<vmem>>, vector<1x8x512xf32>
    %116 = vector.shape_cast %115 : vector<1x8x512xf32> to vector<8x512xf32>
    %117 = vector.shape_cast %69 : vector<8x512xf32> to vector<1x8x512xf32>
    tpu.vector_store %arg2[%c14, %c0_59, %c0_60], %117 {strides = array<i32>} : memref<16x8x512xf32, #tpu.memory_space<vmem>>, vector<1x8x512xf32>,
    %c15 = arith.constant 15 : index
    %c0_61 = arith.constant 0 : index
    %c0_62 = arith.constant 0 : index
    %118 = vector.load %arg2[%c15, %c0_61, %c0_62] : memref<16x8x512xf32, #tpu.memory_space<vmem>>, vector<1x8x512xf32>
    %119 = vector.shape_cast %118 : vector<1x8x512xf32> to vector<8x512xf32>
    %120 = vector.shape_cast %72 : vector<8x512xf32> to vector<1x8x512xf32>
    tpu.vector_store %arg2[%c15, %c0_61, %c0_62], %120 {strides = array<i32>} : memref<16x8x512xf32, #tpu.memory_space<vmem>>, vector<1x8x512xf32>,
    return
  }
  func.func @transform_0(%arg0: i32) -> (i32, i32, i32) {
    %c0_i32 = arith.constant 0 : i32
    %c0_i32_0 = arith.constant 0 : i32
    %c0_i32_1 = arith.constant 0 : i32
    return %c0_i32, %arg0, %c0_i32_0 : i32, i32, i32
  }
  func.func @transform_1(%arg0: i32) -> (i32, i32, i32) {
    %c0_i32 = arith.constant 0 : i32
    %c0_i32_0 = arith.constant 0 : i32
    %c0_i32_1 = arith.constant 0 : i32
    return %c0_i32, %arg0, %c0_i32_0 : i32, i32, i32
  }
}

</mosaic_0001>

<llo_original>
// kernel: sh_encode.1
$region0: #{sh_encode.1}
  #allocation0 [shape = 'u32[]', space=smem, size = 0x4, offset = 0x4, fixed_abs, tag = 'smem constant byte address 0x4 - core index']
  #allocation1 [shape = 'u32[72,128]{1,0:T(1,128)}', space=vmem, size = 0x9000, scoped, tag = 'internal scratch']
  %s0 = inlined_call_operand.vmem [shape: f32[3,8,512], index: 0, kind: input, shape index: {}]
  %s1 = inlined_call_operand.vmem [shape: f32[16,8,512], index: 1, kind: output, shape index: {}]
  %s2 = sld [smem:[#allocation0]]
  $region14: #{sh_encode.1} parent=0
    _
  %s4 = ssub.s32 1, %s2
  %s5 = scalar_select 0, %s4, %s2
  // Predicated region
  $region2: #{sh_encode.1} parent=0 // pred_check
    _
  $region3: #{sh_encode.1} parent=0 // pred_check_branch
    %7 = sbr.rel (0) target = $region5
  $region4: #{sh_encode.1} parent=0 // pred_region
    _
  $region5: #{sh_encode.1} parent=0 // pred_fallthru
    _
  %v8 = vld [vmem:[%s0] sm:$0xff]
  %v9 = vld [vmem:[%s0 + $0x8] sm:$0xff]
  %v10 = vld [vmem:[%s0 + $0x10] sm:$0xff]
  %v11 = vld [vmem:[%s0 + $0x18] sm:$0xff]
  %s12 = scalar_lea.vmem %s0, 32
  %v13 = vld [vmem:[%s12] sm:$0xff]
  %v14 = vld [vmem:[%s12 + $0x8] sm:$0xff]
  %v15 = vld [vmem:[%s12 + $0x10] sm:$0xff]
  %v16 = vld [vmem:[%s12 + $0x18] sm:$0xff]
  %s17 = scalar_lea.vmem %s0, 64
  %v18 = vld [vmem:[%s17] sm:$0xff]
  %v19 = vld [vmem:[%s17 + $0x8] sm:$0xff]
  %v20 = vld [vmem:[%s17 + $0x10] sm:$0xff]
  %v21 = vld [vmem:[%s17 + $0x18] sm:$0xff]
  %v22 = vmul.f32 %v13, -0.48860252
  %v23 = vmul.f32 %v14, -0.48860252
  %v24 = vmul.f32 %v15, -0.48860252
  %v25 = vmul.f32 %v16, -0.48860252
  %v26 = vmul.f32 %v18, 0.48860252
  %v27 = vmul.f32 %v19, 0.48860252
  %v28 = vmul.f32 %v20, 0.48860252
  %v29 = vmul.f32 %v21, 0.48860252
  %v30 = vmul.f32 %v8, -0.48860252
  %v31 = vmul.f32 %v9, -0.48860252
  %v32 = vmul.f32 %v10, -0.48860252
  %v33 = vmul.f32 %v11, -0.48860252
  %v34 = vmul.f32 %v8, %v8
  %v35 = vmul.f32 %v9, %v9
  %v36 = vmul.f32 %v10, %v10
  %v37 = vmul.f32 %v11, %v11
  %v38 = vmul.f32 %v13, %v13
  %v39 = vmul.f32 %v14, %v14
  %v40 = vmul.f32 %v15, %v15
  %v41 = vmul.f32 %v16, %v16
  %v42 = vmul.f32 %v18, %v18
  %v43 = vmul.f32 %v19, %v19
  %v44 = vmul.f32 %v20, %v20
  %v45 = vmul.f32 %v21, %v21
  %v46 = vmul.f32 %v8, %v13
  %v47 = vmul.f32 %v9, %v14
  %v48 = vmul.f32 %v10, %v15
  %v49 = vmul.f32 %v11, %v16
  %v50 = vmul.f32 %v13, %v18
  %v51 = vmul.f32 %v14, %v19
  %v52 = vmul.f32 %v15, %v20
  %v53 = vmul.f32 %v16, %v21
  %v54 = vmul.f32 %v8, %v18
  %v55 = vmul.f32 %v9, %v19
  %v56 = vmul.f32 %v10, %v20
  %v57 = vmul.f32 %v11, %v21
  %v58 = vsub.f32 %v34, %v38
  %v59 = vsub.f32 %v35, %v39
  %v60 = vsub.f32 %v36, %v40
  %v61 = vsub.f32 %v37, %v41
  %v62 = vmul.f32 %v46, 1.0925485
  %v63 = vmul.f32 %v47, 1.0925485
  %v64 = vmul.f32 %v48, 1.0925485
  %v65 = vmul.f32 %v49, 1.0925485
  %v66 = vmul.f32 %v50, -1.0925485
  %v67 = vmul.f32 %v51, -1.0925485
  %v68 = vmul.f32 %v52, -1.0925485
  %v69 = vmul.f32 %v53, -1.0925485
  %v70 = vmul.f32 %v42, 2.0
  %v71 = vmul.f32 %v43, 2.0
  %v72 = vmul.f32 %v44, 2.0
  %v73 = vmul.f32 %v45, 2.0
  %v74 = vsub.f32 %v70, %v34
  %v75 = vsub.f32 %v71, %v35
  %v76 = vsub.f32 %v72, %v36
  %v77 = vsub.f32 %v73, %v37
  %v78 = vsub.f32 %v74, %v38
  %v79 = vsub.f32 %v75, %v39
  %v80 = vsub.f32 %v76, %v40
  %v81 = vsub.f32 %v77, %v41
  %v82 = vmul.f32 %v78, 0.31539157
  %v83 = vmul.f32 %v79, 0.31539157
  %v84 = vmul.f32 %v80, 0.31539157
  %v85 = vmul.f32 %v81, 0.31539157
  %v86 = vmul.f32 %v54, -1.0925485
  %v87 = vmul.f32 %v55, -1.0925485
  %v88 = vmul.f32 %v56, -1.0925485
  %v89 = vmul.f32 %v57, -1.0925485
  %v90 = vmul.f32 %v58, 0.54627424
  %v91 = vmul.f32 %v59, 0.54627424
  %v92 = vmul.f32 %v60, 0.54627424
  %v93 = vmul.f32 %v61, 0.54627424
  %v94 = vmul.f32 %v34, 3.0
  %v95 = vmul.f32 %v35, 3.0
  %v96 = vmul.f32 %v36, 3.0
  %v97 = vmul.f32 %v37, 3.0
  %v98 = vsub.f32 %v94, %v38
  %v99 = vsub.f32 %v95, %v39
  %v100 = vsub.f32 %v96, %v40
  %v101 = vsub.f32 %v97, %v41
  %v102 = vmul.f32 %v38, 3.0
  %v103 = vmul.f32 %v39, 3.0
  %v104 = vmul.f32 %v40, 3.0
  %v105 = vmul.f32 %v41, 3.0
  %v106 = vsub.f32 %v34, %v102
  %v107 = vsub.f32 %v35, %v103
  %v108 = vsub.f32 %v36, %v104
  %v109 = vsub.f32 %v37, %v105
  %v110 = vmul.f32 %v42, 4.0
  %v111 = vmul.f32 %v43, 4.0
  %v112 = vmul.f32 %v44, 4.0
  %v113 = vmul.f32 %v45, 4.0
  %v114 = vsub.f32 %v110, %v34
  %v115 = vsub.f32 %v111, %v35
  %v116 = vsub.f32 %v112, %v36
  %v117 = vsub.f32 %v113, %v37
  %v118 = vsub.f32 %v114, %v38
  %v119 = vsub.f32 %v115, %v39
  %v120 = vsub.f32 %v116, %v40
  %v121 = vsub.f32 %v117, %v41
  %v122 = vmul.f32 %v13, -0.5900436
  %v123 = vmul.f32 %v14, -0.5900436
  %v124 = vmul.f32 %v15, -0.5900436
  %v125 = vmul.f32 %v16, -0.5900436
  %v126 = vmul.f32 %v122, %v98
  %v127 = vmul.f32 %v123, %v99
  %v128 = vmul.f32 %v124, %v100
  %v129 = vmul.f32 %v125, %v101
  %v130 = vmul.f32 %v46, 2.8906114
  %v131 = vmul.f32 %v47, 2.8906114
  %v132 = vmul.f32 %v48, 2.8906114
  %v133 = vmul.f32 %v49, 2.8906114
  %v134 = vmul.f32 %v130, %v18
  %v135 = vmul.f32 %v131, %v19
  %v136 = vmul.f32 %v132, %v20
  %v137 = vmul.f32 %v133, %v21
  %v138 = vmul.f32 %v13, -0.4570458
  %v139 = vmul.f32 %v14, -0.4570458
  %v140 = vmul.f32 %v15, -0.4570458
  %v141 = vmul.f32 %v16, -0.4570458
  %v142 = vmul.f32 %v138, %v118
  %v143 = vmul.f32 %v139, %v119
  %v144 = vmul.f32 %v140, %v120
  %v145 = vmul.f32 %v141, %v121
  %v146 = vmul.f32 %v18, 0.37317634
  %v147 = vmul.f32 %v19, 0.37317634
  %v148 = vmul.f32 %v20, 0.37317634
  %v149 = vmul.f32 %v21, 0.37317634
  %v150 = vsub.f32 %v70, %v94
  %v151 = vsub.f32 %v71, %v95
  %v152 = vsub.f32 %v72, %v96
  %v153 = vsub.f32 %v73, %v97
  %v154 = vsub.f32 %v150, %v102
  %v155 = vsub.f32 %v151, %v103
  %v156 = vsub.f32 %v152, %v104
  %v157 = vsub.f32 %v153, %v105
  %v158 = vmul.f32 %v146, %v154
  %v159 = vmul.f32 %v147, %v155
  %v160 = vmul.f32 %v148, %v156
  %v161 = vmul.f32 %v149, %v157
  %v162 = vmul.f32 %v8, -0.4570458
  %v163 = vmul.f32 %v9, -0.4570458
  %v164 = vmul.f32 %v10, -0.4570458
  %v165 = vmul.f32 %v11, -0.4570458
  %v166 = vmul.f32 %v162, %v118
  %v167 = vmul.f32 %v163, %v119
  %v168 = vmul.f32 %v164, %v120
  %v169 = vmul.f32 %v165, %v121
  %v170 = vmul.f32 %v18, 1.4453057
  %v171 = vmul.f32 %v19, 1.4453057
  %v172 = vmul.f32 %v20, 1.4453057
  %v173 = vmul.f32 %v21, 1.4453057
  %v174 = vmul.f32 %v170, %v58
  %v175 = vmul.f32 %v171, %v59
  %v176 = vmul.f32 %v172, %v60
  %v177 = vmul.f32 %v173, %v61
  %v178 = vmul.f32 %v8, -0.5900436
  %v179 = vmul.f32 %v9, -0.5900436
  %v180 = vmul.f32 %v10, -0.5900436
  %v181 = vmul.f32 %v11, -0.5900436
  %v182 = vmul.f32 %v178, %v106
  %v183 = vmul.f32 %v179, %v107
  %v184 = vmul.f32 %v180, %v108
  %v185 = vmul.f32 %v181, %v109
  %186 = vst [vmem:[%s1] sm:$0xff] 0.2820948
  %187 = vst [vmem:[%s1 + $0x8] sm:$0xff] 0.2820948
  %188 = vst [vmem:[%s1 + $0x10] sm:$0xff] 0.2820948
  %189 = vst [vmem:[%s1 + $0x18] sm:$0xff] 0.2820948
  %s190 = scalar_lea.vmem %s1, 32
  %191 = vst [vmem:[%s190] sm:$0xff] %v22
  %192 = vst [vmem:[%s190 + $0x8] sm:$0xff] %v23
  %193 = vst [vmem:[%s190 + $0x10] sm:$0xff] %v24
  %194 = vst [vmem:[%s190 + $0x18] sm:$0xff] %v25
  %s195 = scalar_lea.vmem %s1, 64
  %196 = vst [vmem:[%s195] sm:$0xff] %v26
  %197 = vst [vmem:[%s195 + $0x8] sm:$0xff] %v27
  %198 = vst [vmem:[%s195 + $0x10] sm:$0xff] %v28
  %199 = vst [vmem:[%s195 + $0x18] sm:$0xff] %v29
  %s200 = scalar_lea.vmem %s1, 96
  %201 = vst [vmem:[%s200] sm:$0xff] %v30
  %202 = vst [vmem:[%s200 + $0x8] sm:$0xff] %v31
  %203 = vst [vmem:[%s200 + $0x10] sm:$0xff] %v32
  %204 = vst [vmem:[%s200 + $0x18] sm:$0xff] %v33
  %s205 = scalar_lea.vmem %s1, 128
  %206 = vst [vmem:[%s205] sm:$0xff] %v62
  %207 = vst [vmem:[%s205 + $0x8] sm:$0xff] %v63
  %208 = vst [vmem:[%s205 + $0x10] sm:$0xff] %v64
  %209 = vst [vmem:[%s205 + $0x18] sm:$0xff] %v65
  %s210 = scalar_lea.vmem %s1, 160
  %211 = vst [vmem:[%s210] sm:$0xff] %v66
  %212 = vst [vmem:[%s210 + $0x8] sm:$0xff] %v67
  %213 = vst [vmem:[%s210 + $0x10] sm:$0xff] %v68
  %214 = vst [vmem:[%s210 + $0x18] sm:$0xff] %v69
  %s215 = scalar_lea.vmem %s1, 192
  %216 = vst [vmem:[%s215] sm:$0xff] %v82
  %217 = vst [vmem:[%s215 + $0x8] sm:$0xff] %v83
  %218 = vst [vmem:[%s215 + $0x10] sm:$0xff] %v84
  %219 = vst [vmem:[%s215 + $0x18] sm:$0xff] %v85
  %s220 = scalar_lea.vmem %s1, 224
  %221 = vst [vmem:[%s220] sm:$0xff] %v86
  %222 = vst [vmem:[%s220 + $0x8] sm:$0xff] %v87
  %223 = vst [vmem:[%s220 + $0x10] sm:$0xff] %v88
  %224 = vst [vmem:[%s220 + $0x18] sm:$0xff] %v89
  %s225 = scalar_lea.vmem %s1, 256
  %226 = vst [vmem:[%s225] sm:$0xff] %v90
  %227 = vst [vmem:[%s225 + $0x8] sm:$0xff] %v91
  %228 = vst [vmem:[%s225 + $0x10] sm:$0xff] %v92
  %229 = vst [vmem:[%s225 + $0x18] sm:$0xff] %v93
  %s230 = scalar_lea.vmem %s1, 288
  %231 = vst [vmem:[%s230] sm:$0xff] %v126
  %232 = vst [vmem:[%s230 + $0x8] sm:$0xff] %v127
  %233 = vst [vmem:[%s230 + $0x10] sm:$0xff] %v128
  %234 = vst [vmem:[%s230 + $0x18] sm:$0xff] %v129
  %s235 = scalar_lea.vmem %s1, 320
  %236 = vst [vmem:[%s235] sm:$0xff] %v134
  %237 = vst [vmem:[%s235 + $0x8] sm:$0xff] %v135
  %238 = vst [vmem:[%s235 + $0x10] sm:$0xff] %v136
  %239 = vst [vmem:[%s235 + $0x18] sm:$0xff] %v137
  %s240 = scalar_lea.vmem %s1, 352
  %241 = vst [vmem:[%s240] sm:$0xff] %v142
  %242 = vst [vmem:[%s240 + $0x8] sm:$0xff] %v143
  %243 = vst [vmem:[%s240 + $0x10] sm:$0xff] %v144
  %244 = vst [vmem:[%s240 + $0x18] sm:$0xff] %v145
  %s245 = scalar_lea.vmem %s1, 384
  %246 = vst [vmem:[%s245] sm:$0xff] %v158
  %247 = vst [vmem:[%s245 + $0x8] sm:$0xff] %v159
  %248 = vst [vmem:[%s245 + $0x10] sm:$0xff] %v160
  %249 = vst [vmem:[%s245 + $0x18] sm:$0xff] %v161
  %s250 = scalar_lea.vmem %s1, 416
  %251 = vst [vmem:[%s250] sm:$0xff] %v166
  %252 = vst [vmem:[%s250 + $0x8] sm:$0xff] %v167
  %253 = vst [vmem:[%s250 + $0x10] sm:$0xff] %v168
  %254 = vst [vmem:[%s250 + $0x18] sm:$0xff] %v169
  %s255 = scalar_lea.vmem %s1, 448
  %256 = vst [vmem:[%s255] sm:$0xff] %v174
  %257 = vst [vmem:[%s255 + $0x8] sm:$0xff] %v175
  %258 = vst [vmem:[%s255 + $0x10] sm:$0xff] %v176
  %259 = vst [vmem:[%s255 + $0x18] sm:$0xff] %v177
  %s260 = scalar_lea.vmem %s1, 480
  %261 = vst [vmem:[%s260] sm:$0xff] %v182
  %262 = vst [vmem:[%s260 + $0x8] sm:$0xff] %v183
  %263 = vst [vmem:[%s260 + $0x10] sm:$0xff] %v184
  %264 = vst [vmem:[%s260 + $0x18] sm:$0xff] %v185
  // Predicated region
  $region6: #{sh_encode.1} parent=0 // pred_check
    _
  $region7: #{sh_encode.1} parent=0 // pred_check_branch
    %266 = sbr.rel (0) target = $region9
  $region8: #{sh_encode.1} parent=0 // pred_region
    _
  $region9: #{sh_encode.1} parent=0 // pred_fallthru
    _
  // Predicated region
  $region10: #{sh_encode.1} parent=0 // pred_check
    _
  $region11: #{sh_encode.1} parent=0 // pred_check_branch
    %268 = sbr.rel (0) target = $region13
  $region12: #{sh_encode.1} parent=0 // pred_region
    _
  $region13: #{sh_encode.1} parent=0 // pred_fallthru
    _

</llo_original>
